<compile_context>
chip_gen: v5e
topology: v5e:2x2
jax: 0.10.0
libtpu: 0.0.40
codegen_flags: <defaults>
</compile_context>

<pallas_src>
import functools

import jax
import jax.numpy as jnp
from jax.experimental import pallas as pl
from jax.experimental.pallas import tpu as pltpu

_OUT_LANES = 128  # lane-dense partial-sum output block width


def _round_up(x, m):
    return (x + m - 1) // m * m


def _cclc_kernel(rowlab_ref, collab_ref, inv_cw_ref, dinv_ref,
                 q_ref, kt_ref, out_ref, *, n_valid, inv_temp):
    # Fold temperature into q before the MXU (scales TR*Dp, not TR*Np).
    q = q_ref[...] * inv_temp                          # (TR, Dp)
    kt = kt_ref[...]                                   # (Dp, Np)

    logits = jnp.dot(q, kt, preferred_element_type=jnp.float32)   # (TR, Np) f32

    tr, np_ = logits.shape
    col_ids = jax.lax.broadcasted_iota(jnp.int32, (tr, np_), 1)
    row_ids = (jax.lax.broadcasted_iota(jnp.int32, (tr, np_), 0)
               + pl.program_id(0) * tr)
    col_valid = col_ids < n_valid                      # lane-padding columns
    diag = col_ids == row_ids                          # self-similarity (rows < R)

    # Numerically-stable softmax: row max over valid columns (incl. the diagonal,
    # exactly like the PyTorch reference which subtracts max before masking exp).
    logits = jnp.where(col_valid, logits, jnp.float32(-1e30))
    logits = logits - jnp.max(logits, axis=1, keepdims=True)

    # Rebuild the positives mask from the tiny label vectors.
    row_lab = rowlab_ref[...]                          # (TR, 1) int32 (padded rows = -2)
    col_lab = collab_ref[...]                          # (1, Np) int32 (padded cols = -1)
    pos = jnp.logical_and(row_lab == col_lab, jnp.logical_not(diag))
    pos_f = pos.astype(jnp.float32)                    # (TR, Np)

    # exp(logits) with the self column removed; padded columns underflow to 0.
    exp_l = jnp.where(diag, 0.0, jnp.exp(logits))

    # per_ins_weight is cw[j] (mask==0) or cw[j]-1 (mask==1). Instead of dividing,
    # select via FMA between two precomputed reciprocal rows:
    #   inv_w = 1/cw + pos * (1/(cw-1) - 1/cw)
    inv_w = inv_cw_ref[...] + pos_f * dinv_ref[...]                # (TR, Np)
    exp_sum = jnp.sum(exp_l * inv_w, axis=1, keepdims=True)        # (TR, 1)
    log_es = jnp.log(exp_sum)

    num = jnp.sum(pos_f * logits, axis=1, keepdims=True)           # (TR, 1)
    den = jnp.sum(pos_f, axis=1, keepdims=True)                    # (TR, 1)

    # mean_log_prob_pos = num/den - log(exp_sum); padded rows (den==0) contribute 0.
    loss_col = jnp.where(den > 0.0,
                         -(num / jnp.maximum(den, 1.0) - log_es),
                         0.0)                                      # (TR, 1)

    partial = jnp.sum(loss_col, axis=0, keepdims=True)             # (1, 1)
    out_ref[...] = jnp.broadcast_to(partial, (1, _OUT_LANES))      # lane-dense store


def cclc_loss_pallas(centers1, features, targets, num_classes, temperature=0.1,
                     block_rows=128, matmul_dtype=jnp.float32):
    """features: (B, 2, D), centers1: (C, D), targets: (B,) int -> scalar loss."""
    B, n_views, D = features.shape
    assert n_views == 2
    C = num_classes
    R = 2 * B                # anchors
    N = R + C                # keys (samples + class centers)

    # ---- tiny label / weight vectors (plain-JAX glue) --------------------
    t = targets.reshape(-1).astype(jnp.int32)
    targets_all = jnp.concatenate([t, t, jnp.arange(C, dtype=jnp.int32)])     # (N,)
    counts = jnp.sum(jax.nn.one_hot(targets_all, C, dtype=jnp.float32), axis=0)
    cw = counts[targets_all]                                                  # (N,), >= 1
    inv_cw = 1.0 / cw
    inv_cwm1 = 1.0 / jnp.maximum(cw - 1.0, 0.5)   # only selected where cw >= 2
    dinv = inv_cwm1 - inv_cw

    feats = jnp.concatenate([features[:, 0, :], features[:, 1, :]], axis=0)   # (R, D)
    allf = jnp.concatenate([feats, centers1], axis=0).astype(jnp.float32)     # (N, D)

    # ---- pad to TPU-friendly tiles ---------------------------------------
    TR = _round_up(R, 8) if R <= block_rows else block_rows
    Rp = _round_up(R, TR)
    G = Rp // TR
    Np = _round_up(N, 128)
    Dp = _round_up(D, 8)          # contraction dim sits on kT's sublane axis

    q_p = (jnp.zeros((Rp, Dp), jnp.float32).at[:R, :D].set(allf[:R])
           .astype(matmul_dtype))
    kt_p = (jnp.zeros((Dp, Np), jnp.float32).at[:D, :N].set(allf.T)
            .astype(matmul_dtype))
    rowlab_p = jnp.full((Rp, 1), -2, jnp.int32).at[:R, 0].set(targets_all[:R])
    collab_p = jnp.full((1, Np), -1, jnp.int32).at[0, :N].set(targets_all)
    inv_cw_p = jnp.ones((1, Np), jnp.float32).at[0, :N].set(inv_cw)
    dinv_p = jnp.zeros((1, Np), jnp.float32).at[0, :N].set(dinv)

    kernel = functools.partial(_cclc_kernel, n_valid=N,
                               inv_temp=float(1.0 / temperature))
    out = pl.pallas_call(
        kernel,
        out_shape=jax.ShapeDtypeStruct((1, G * _OUT_LANES), jnp.float32),
        grid=(G,),
        in_specs=[
            pl.BlockSpec((TR, 1), lambda i: (i, 0)),      # anchor-row labels
            pl.BlockSpec((1, Np), lambda i: (0, 0)),      # key labels
            pl.BlockSpec((1, Np), lambda i: (0, 0)),      # 1 / cw
            pl.BlockSpec((1, Np), lambda i: (0, 0)),      # 1/(cw-1) - 1/cw
            pl.BlockSpec((TR, Dp), lambda i: (i, 0)),     # q row tile
            pl.BlockSpec((Dp, Np), lambda i: (0, 0)),     # kT (full)
        ],
        out_specs=pl.BlockSpec((1, _OUT_LANES), lambda i: (0, i)),
        compiler_params=pltpu.CompilerParams(
            dimension_semantics=("parallel",)),
    )(rowlab_p, collab_p, inv_cw_p, dinv_p, q_p, kt_p)

    # Tiny final reduce over per-block partial sums (== loss.view(2, B).mean()).
    partials = out.reshape(G, _OUT_LANES)[:, 0]
    return jnp.sum(partials) / R


def cclc_loss_ref(centers1, features, targets, num_classes, temperature=0.1):
    """Pure-JAX reference mirroring the PyTorch forward, for verification."""
    B = features.shape[0]
    R = 2 * B
    t = targets.reshape(-1).astype(jnp.int32)
    targets_all = jnp.concatenate([t, t, jnp.arange(num_classes, dtype=jnp.int32)])
    counts = jnp.sum(jax.nn.one_hot(targets_all, num_classes, dtype=jnp.float32), axis=0)
    cw = counts[targets_all]
    mask = (targets_all[:R, None] == targets_all[None, :]).astype(jnp.float32)
    lmask = jnp.ones((R, R + num_classes), jnp.float32).at[
        jnp.arange(R), jnp.arange(R)].set(0.0)
    mask = mask * lmask
    feats = jnp.concatenate([features[:, 0, :], features[:, 1, :]], axis=0)
    allf = jnp.concatenate([feats, centers1], axis=0).astype(jnp.float32)
    logits = feats.astype(jnp.float32) @ allf.T / temperature
    logits = logits - jnp.max(logits, axis=1, keepdims=True)
    exp_logits = jnp.exp(logits) * lmask
    piw = cw[None, :] - mask
    es = jnp.sum(exp_logits / piw, axis=1, keepdims=True)
    log_prob = logits - jnp.log(es)
    mlpp = jnp.sum(mask * log_prob, axis=1) / jnp.sum(mask, axis=1)
    return jnp.mean(-mlpp)


if __name__ == "__main__":
    key = jax.random.PRNGKey(0)
    B, C, D = 8, 4, 32
    k1, k2, k3 = jax.random.split(key, 3)

    features = jax.random.normal(k1, (B, 2, D), jnp.float32)
    features = features / jnp.linalg.norm(features, axis=-1, keepdims=True)
    centers1 = jax.random.normal(k2, (C, D), jnp.float32)
    centers1 = centers1 / jnp.linalg.norm(centers1, axis=-1, keepdims=True)
    targets = jax.random.randint(k3, (B,), 0, C, jnp.int32)

    loss = cclc_loss_pallas(centers1, features, targets, C, temperature=0.1)
    loss = jax.block_until_ready(loss)

    ref = cclc_loss_ref(centers1, features, targets, C, temperature=0.1)
    assert jnp.isfinite(loss), loss
    assert jnp.allclose(loss, ref, atol=1e-4, rtol=1e-4), (loss, ref)
    print("KERNEL_OK")
</pallas_src>

<mosaic_0001>
module attributes {stable_mosaic.version = 11 : i64} {
  func.func @_cclc_kernel(%arg0: i32, %arg1: memref<16x1xi32, #tpu.memory_space<vmem>>, %arg2: memref<1x128xi32, #tpu.memory_space<vmem>>, %arg3: memref<1x128xf32, #tpu.memory_space<vmem>>, %arg4: memref<1x128xf32, #tpu.memory_space<vmem>>, %arg5: memref<16x32xf32, #tpu.memory_space<vmem>>, %arg6: memref<32x128xf32, #tpu.memory_space<vmem>>, %arg7: memref<1x128xf32, #tpu.memory_space<vmem>>) attributes {dimension_semantics = [#tpu.dimension_semantics<parallel>], iteration_bounds = array<i64: 1>, scalar_prefetch = 0 : i64, scratch_operands = 0 : i64, tpu.core_type = #tpu.core_type<tc>, window_params = [{transform_indices = @transform_0, window_bounds = array<i64: 16, 1>}, {pipeline_mode = #tpu.pipeline_mode<synchronous>, transform_indices = @transform_1, window_bounds = array<i64: 1, 128>}, {pipeline_mode = #tpu.pipeline_mode<synchronous>, transform_indices = @transform_2, window_bounds = array<i64: 1, 128>}, {pipeline_mode = #tpu.pipeline_mode<synchronous>, transform_indices = @transform_3, window_bounds = array<i64: 1, 128>}, {transform_indices = @transform_4, window_bounds = array<i64: 16, 32>}, {pipeline_mode = #tpu.pipeline_mode<synchronous>, transform_indices = @transform_5, window_bounds = array<i64: 32, 128>}, {transform_indices = @transform_6, window_bounds = array<i64: 1, 128>}]} {
    %c0 = arith.constant 0 : index
    %c0_0 = arith.constant 0 : index
    %0 = vector.load %arg5[%c0, %c0_0] : memref<16x32xf32, #tpu.memory_space<vmem>>, vector<16x32xf32>
    %cst = arith.constant 1.000000e+01 : f32
    %1 = vector.broadcast %cst : f32 to vector<16x32xf32>
    %2 = arith.mulf %0, %1 : vector<16x32xf32>
    %c0_1 = arith.constant 0 : index
    %c0_2 = arith.constant 0 : index
    %3 = vector.load %arg6[%c0_1, %c0_2] : memref<32x128xf32, #tpu.memory_space<vmem>>, vector<32x128xf32>
    %cst_3 = arith.constant dense<0.000000e+00> : vector<16x128xf32>
    %4 = tpu.matmul %2, %3, %cst_3 {dimension_numbers = #tpu.dot_dimension_numbers<[1], [0], [0], [1], [0, 0, 1, 1], [], []>} : vector<16x32xf32>, vector<32x128xf32>, vector<16x128xf32> -> vector<16x128xf32>
    %5 = tpu.iota {dimensions = array<i32: 1>} : vector<16x128xi32>
    %6 = tpu.iota {dimensions = array<i32: 0>} : vector<16x128xi32>
    %c16_i32 = arith.constant 16 : i32
    %7 = arith.muli %arg0, %c16_i32 : i32
    %8 = vector.broadcast %7 : i32 to vector<16x128xi32>
    %9 = arith.addi %6, %8 : vector<16x128xi32>
    %c20_i32 = arith.constant 20 : i32
    %10 = vector.broadcast %c20_i32 : i32 to vector<16x128xi32>
    %11 = arith.cmpi slt, %5, %10 : vector<16x128xi32>
    %12 = arith.cmpi eq, %5, %9 : vector<16x128xi32>
    %cst_4 = arith.constant -1.000000e+30 : f32
    %13 = vector.broadcast %cst_4 : f32 to vector<16x128xf32>
    %14 = arith.select %11, %4, %13 : vector<16x128xi1>, vector<16x128xf32>
    %cst_5 = arith.constant dense<0xFF800000> : vector<16xf32>
    %15 = vector.multi_reduction <maximumf>, %14, %cst_5 [1] : vector<16x128xf32> to vector<16xf32>
    %16 = vector.shape_cast %15 : vector<16xf32> to vector<16x1xf32>
    %17 = vector.broadcast %16 : vector<16x1xf32> to vector<16x128xf32>
    %18 = arith.subf %14, %17 : vector<16x128xf32>
    %c0_6 = arith.constant 0 : index
    %c0_7 = arith.constant 0 : index
    %19 = vector.load %arg1[%c0_6, %c0_7] : memref<16x1xi32, #tpu.memory_space<vmem>>, vector<16x1xi32>
    %c0_8 = arith.constant 0 : index
    %c0_9 = arith.constant 0 : index
    %20 = vector.load %arg2[%c0_8, %c0_9] : memref<1x128xi32, #tpu.memory_space<vmem>>, vector<1x128xi32>
    %21 = vector.broadcast %19 : vector<16x1xi32> to vector<16x128xi32>
    %22 = vector.broadcast %20 : vector<1x128xi32> to vector<16x128xi32>
    %23 = arith.cmpi eq, %21, %22 : vector<16x128xi32>
    %cst_10 = arith.constant dense<true> : vector<16x128xi1>
    %24 = arith.xori %12, %cst_10 : vector<16x128xi1>
    %25 = arith.andi %23, %24 : vector<16x128xi1>
    %26 = arith.extui %25 : vector<16x128xi1> to vector<16x128xi32>
    %27 = arith.sitofp %26 : vector<16x128xi32> to vector<16x128xf32>
    %28 = math.exp %18 : vector<16x128xf32>
    %cst_11 = arith.constant 0.000000e+00 : f32
    %29 = vector.broadcast %cst_11 : f32 to vector<16x128xf32>
    %30 = arith.select %12, %29, %28 : vector<16x128xi1>, vector<16x128xf32>
    %c0_12 = arith.constant 0 : index
    %c0_13 = arith.constant 0 : index
    %31 = vector.load %arg3[%c0_12, %c0_13] : memref<1x128xf32, #tpu.memory_space<vmem>>, vector<1x128xf32>
    %c0_14 = arith.constant 0 : index
    %c0_15 = arith.constant 0 : index
    %32 = vector.load %arg4[%c0_14, %c0_15] : memref<1x128xf32, #tpu.memory_space<vmem>>, vector<1x128xf32>
    %33 = vector.broadcast %32 : vector<1x128xf32> to vector<16x128xf32>
    %34 = arith.mulf %27, %33 : vector<16x128xf32>
    %35 = vector.broadcast %31 : vector<1x128xf32> to vector<16x128xf32>
    %36 = arith.addf %35, %34 : vector<16x128xf32>
    %37 = arith.mulf %30, %36 : vector<16x128xf32>
    %cst_16 = arith.constant dense<0.000000e+00> : vector<16xf32>
    %38 = vector.multi_reduction <add>, %37, %cst_16 [1] : vector<16x128xf32> to vector<16xf32>
    %39 = vector.shape_cast %38 : vector<16xf32> to vector<16x1xf32>
    %40 = math.log %39 : vector<16x1xf32>
    %41 = arith.mulf %27, %18 : vector<16x128xf32>
    %cst_17 = arith.constant dense<0.000000e+00> : vector<16xf32>
    %42 = vector.multi_reduction <add>, %41, %cst_17 [1] : vector<16x128xf32> to vector<16xf32>
    %43 = vector.shape_cast %42 : vector<16xf32> to vector<16x1xf32>
    %cst_18 = arith.constant dense<0.000000e+00> : vector<16xf32>
    %44 = vector.multi_reduction <add>, %27, %cst_18 [1] : vector<16x128xf32> to vector<16xf32>
    %45 = vector.shape_cast %44 : vector<16xf32> to vector<16x1xf32>
    %cst_19 = arith.constant 0.000000e+00 : f32
    %46 = vector.broadcast %cst_19 : f32 to vector<16x1xf32>
    %47 = arith.cmpf ogt, %45, %46 : vector<16x1xf32>
    %cst_20 = arith.constant 1.000000e+00 : f32
    %48 = vector.broadcast %cst_20 : f32 to vector<16x1xf32>
    %49 = arith.maximumf %45, %48 : vector<16x1xf32>
    %50 = arith.divf %43, %49 : vector<16x1xf32>
    %51 = arith.subf %50, %40 : vector<16x1xf32>
    %cst_21 = arith.constant 0.000000e+00 : f32
    %52 = vector.broadcast %cst_21 : f32 to vector<16x1xf32>
    %53 = arith.subf %52, %51 : vector<16x1xf32>
    %cst_22 = arith.constant 0.000000e+00 : f32
    %54 = vector.broadcast %cst_22 : f32 to vector<16x1xf32>
    %55 = arith.select %47, %53, %54 : vector<16x1xi1>, vector<16x1xf32>
    %cst_23 = arith.constant dense<0.000000e+00> : vector<1xf32>
    %56 = vector.multi_reduction <add>, %55, %cst_23 [0] : vector<16x1xf32> to vector<1xf32>
    %57 = vector.shape_cast %56 : vector<1xf32> to vector<1x1xf32>
    %58 = vector.shape_cast %57 : vector<1x1xf32> to vector<1x1xf32>
    %59 = vector.broadcast %58 : vector<1x1xf32> to vector<1x128xf32>
    %c0_24 = arith.constant 0 : index
    %c0_25 = arith.constant 0 : index
    %60 = vector.load %arg7[%c0_24, %c0_25] : memref<1x128xf32, #tpu.memory_space<vmem>>, vector<1x128xf32>
    tpu.vector_store %arg7[%c0_24, %c0_25], %59 {strides = array<i32>} : memref<1x128xf32, #tpu.memory_space<vmem>>, vector<1x128xf32>,
    return
  }
  func.func @transform_0(%arg0: i32) -> (i32, i32) {
    %c0_i32 = arith.constant 0 : i32
    %c0_i32_0 = arith.constant 0 : i32
    return %arg0, %c0_i32 : i32, i32
  }
  func.func @transform_1(%arg0: i32) -> (i32, i32) {
    %c0_i32 = arith.constant 0 : i32
    %c0_i32_0 = arith.constant 0 : i32
    %c0_i32_1 = arith.constant 0 : i32
    return %c0_i32, %c0_i32_0 : i32, i32
  }
  func.func @transform_2(%arg0: i32) -> (i32, i32) {
    %c0_i32 = arith.constant 0 : i32
    %c0_i32_0 = arith.constant 0 : i32
    %c0_i32_1 = arith.constant 0 : i32
    return %c0_i32, %c0_i32_0 : i32, i32
  }
  func.func @transform_3(%arg0: i32) -> (i32, i32) {
    %c0_i32 = arith.constant 0 : i32
    %c0_i32_0 = arith.constant 0 : i32
    %c0_i32_1 = arith.constant 0 : i32
    return %c0_i32, %c0_i32_0 : i32, i32
  }
  func.func @transform_4(%arg0: i32) -> (i32, i32) {
    %c0_i32 = arith.constant 0 : i32
    %c0_i32_0 = arith.constant 0 : i32
    return %arg0, %c0_i32 : i32, i32
  }
  func.func @transform_5(%arg0: i32) -> (i32, i32) {
    %c0_i32 = arith.constant 0 : i32
    %c0_i32_0 = arith.constant 0 : i32
    %c0_i32_1 = arith.constant 0 : i32
    return %c0_i32, %c0_i32_0 : i32, i32
  }
  func.func @transform_6(%arg0: i32) -> (i32, i32) {
    %c0_i32 = arith.constant 0 : i32
    %c0_i32_0 = arith.constant 0 : i32
    return %c0_i32, %arg0 : i32, i32
  }
}

</mosaic_0001>

<llo_original>
// kernel: tpu_custom_call.1
$region0: #{tpu_custom_call.1}
  #allocation0 [shape = 'u32[]', space=smem, size = 0x4, offset = 0x4, fixed_abs, tag = 'smem constant byte address 0x4 - core index']
  #allocation1 [shape = 'u32[72,128]{1,0:T(1,128)}', space=vmem, size = 0x9000, scoped, tag = 'internal scratch']
  %s0 = inlined_call_operand.vmem [shape: s32[16,1], index: 0, kind: input, shape index: {}]
  %s1 = inlined_call_operand.vmem [shape: s32[1,128], index: 1, kind: input, shape index: {}]
  %s2 = inlined_call_operand.vmem [shape: f32[1,128], index: 2, kind: input, shape index: {}]
  %s3 = inlined_call_operand.vmem [shape: f32[1,128], index: 3, kind: input, shape index: {}]
  %s4 = inlined_call_operand.vmem [shape: f32[16,32], index: 4, kind: input, shape index: {}]
  %s5 = inlined_call_operand.hbm [shape: f32[32,128], index: 5, kind: input, shape index: {}]
  %s6 = inlined_call_operand.hbm [shape: f32[1,128], index: 6, kind: output, shape index: {}]
  %s7 = sld [smem:[#allocation0]]
  $region38: #{tpu_custom_call.1} parent=0
    _
  %s9 = ssub.s32 1, %s7
  %s10 = scalar_select 0, %s9, %s7
  $region1: #{tpu_custom_call.1} parent=0
    #allocation2 [shape = 'u8[16384]{0}', space=vmem, size = 0x4000, scoped, tag = 'input window, operand 5, single buffered']
    #allocation3 [shape = 's32[1]{0}', space=sflag, size = 0x4, scoped, tag = 'scoped memory for tpu_custom_call.1']
    #allocation4 [shape = 's32[1]{0}', space=sflag, size = 0x4, scoped, tag = 'scoped memory for tpu_custom_call.1']
    #allocation5 [shape = 'u8[512]{0}', space=vmem, size = 0x400, scoped, tag = 'output window, operand 0, single buffered']
    %11 = vsyncpa [#allocation3], 0
    %12 = vsyncpa [#allocation4], 0
    // Predicated region
    $region2: #{tpu_custom_call.1} parent=1 // pred_check
      _
    $region3: #{tpu_custom_call.1} parent=1 // pred_check_branch
      %14 = sbr.rel (0) target = $region5
    $region4: #{tpu_custom_call.1} parent=1 // pred_region
      _
    $region5: #{tpu_custom_call.1} parent=1 // pred_fallthru
      _
    // Predicated region
    $region6: #{tpu_custom_call.1} parent=1 // pred_check
      _
    $region7: #{tpu_custom_call.1} parent=1 // pred_check_branch
      %16 = sbr.rel (0) target = $region9
    $region8: #{tpu_custom_call.1} parent=1 // pred_region
      _
    $region9: #{tpu_custom_call.1} parent=1 // pred_fallthru
      _
    // Predicated region
    $region10: #{tpu_custom_call.1} parent=1 // pred_check
      _
    $region11: #{tpu_custom_call.1} parent=1 // pred_check_branch
      %18 = sbr.rel (0) target = $region13
    $region12: #{tpu_custom_call.1} parent=1 // pred_region
      _
    $region13: #{tpu_custom_call.1} parent=1 // pred_fallthru
      _
    // Predicated region
    $region14: #{tpu_custom_call.1} parent=1 // pred_check
      _
    $region15: #{tpu_custom_call.1} parent=1 // pred_check_branch
      %20 = sbr.rel (0) target = $region17
    $region16: #{tpu_custom_call.1} parent=1 // pred_region
      _
    $region17: #{tpu_custom_call.1} parent=1 // pred_fallthru
      _
    // Predicated region
    $region18: #{tpu_custom_call.1} parent=1 // pred_check
      _
    $region19: #{tpu_custom_call.1} parent=1 // pred_check_branch
      %22 = sbr.rel (0) target = $region21
    $region20: #{tpu_custom_call.1} parent=1 // pred_region
      _
    $region21: #{tpu_custom_call.1} parent=1 // pred_fallthru
      _
    // Predicated region
    $region22: #{tpu_custom_call.1} parent=1 // pred_check
      _
    $region23: #{tpu_custom_call.1} parent=1 // pred_check_branch
      %24 = sbr.rel (0) target = $region25
    $region24: #{tpu_custom_call.1} parent=1 // pred_region
      %26 = vsyncadd [#allocation3], 0
      %s27 = sshll.u32 %s5, 4
      %s28 = int_to_ptr.hbm [resolvable:$true] %s27
      %s29 = sshll.u32 [#allocation2], 4
      %s30 = int_to_ptr.vmem [resolvable:$true] %s29
      %35 = dma.hbm_to_vmem [thread:$0]  %s28, 512, %s30, [#allocation3], 128, 128, 8
    $region25: #{tpu_custom_call.1} parent=1 // pred_fallthru
      _
    // Predicated region
    $region26: #{tpu_custom_call.1} parent=1 // pred_check
      _
    $region27: #{tpu_custom_call.1} parent=1 // pred_check_branch
      %37 = sbr.rel (0) target = $region29
    $region28: #{tpu_custom_call.1} parent=1 // pred_region
      %39 = dma.done [#allocation3], 512
    $region29: #{tpu_custom_call.1} parent=1 // pred_fallthru
      _
    %v40 = vld [vmem:[%s4] sm:$0xff]
    %v41 = vld [vmem:[%s4 + $0x8] sm:$0xff]
    %v42 = vmul.f32 %v40, 10.0
    %v43 = vmul.f32 %v41, 10.0
    %v44 = vld [vmem:[#allocation2] sm:$0xff]
    %v45 = vld [vmem:[#allocation2 + $0x8] sm:$0xff]
    %v46 = vld [vmem:[#allocation2 + $0x10] sm:$0xff]
    %v47 = vld [vmem:[#allocation2 + $0x18] sm:$0xff]
    %vm48 = vcmask 261120
    %v50 = vsel %vm48, %v42, 0
    %v53 = vsel %vm48, %v43, 0
    %55 = vmatpush.msra.mxu0 0.0
    %56 = vmatpush.msra.mxu0 0.0
    %57 = vmatpush.msra.mxu0 0.0
    %58 = vmatpush.msra.mxu0 0.0
    %59 = vmatpush.msra.mxu0 0.0
    %60 = vmatpush.msra.mxu0 0.0
    %61 = vmatpush.msra.mxu0 0.0
    %62 = vmatpush.msra.mxu0 0.0
    %63 = vmatpush.msra.mxu0 0.0
    %64 = vmatpush.msra.mxu0 0.0
    %65 = vmatpush.msra.mxu0 0.0
    %66 = vmatpush.msra.mxu0 0.0
    %67 = vmatpush.msra.mxu0 %v47
    %68 = vmatpush.msra.mxu0 %v46
    %69 = vmatpush.msra.mxu0 %v45
    %70 = vmatpush.msra.mxu0 %v44
    %71 = vmatmul.f32.gmra.mxu0 %v50
    %v72 = vpop.f32.mrf.mxu0
    %v73 = vadd.f32 0.0, %v72
    %74 = vmatmul.f32.gmra.mxu0 %v53
    %v75 = vpop.f32.mrf.mxu0
    %v76 = vadd.f32 0.0, %v75
    %77 = vdwg.mxu0
    %v78 = vlaneseq
    %v79 = vand.u32 %v78, 127
    %v80 = vlaneseq
    %v81 = vshrl.u32 %v80, 7
    %v82 = vadd.s32 %v81, 8
    %s83 = smul.u32 0, 16
    %v84 = vstv %s83
    %v85 = vadd.s32 %v81, %v84
    %v86 = vadd.s32 %v82, %v84
    %vm87 = vcmp.lt.s32.totalorder %v79, 20
    %vm88 = vcmp.eq.s32.totalorder %v79, %v85
    %vm89 = vcmp.eq.s32.totalorder %v79, %v86
    %v90 = vsel %vm87, %v73, -1e+30
    %v91 = vsel %vm87, %v76, -1e+30
    %92 = vmax.xlane.f32.xlu0 %v90
    %v93 = vpop.xlane.xlu0 %92
    %94 = vmax.xlane.f32.xlu0 %v91
    %v95 = vpop.xlane.xlu0 %94
    %v96 = vsub.f32 %v90, %v93
    %v97 = vsub.f32 %v91, %v95
    %v98 = vld [vmem:[%s0] sm:$0xff]
    %v99 = vld [vmem:[%s0 + $0x8] sm:$0xff]
    %v100 = vld [vmem:[%s1] sm:$0x1]
    %101 = vset.pattern.permute.xlu0 0
    %102 = vperm.xlu0 %101, %v98
    %v103 = vpop.permute.xlu0 %102
    %104 = vset.pattern.permute.xlu0 0
    %105 = vperm.xlu0 %104, %v99
    %v106 = vpop.permute.xlu0 %105
    %v107 = vperm.slane %v100, 0
    %vm108 = vcmp.eq.s32.totalorder %v103, %v107
    %vm109 = vcmp.eq.s32.totalorder %v106, %v107
    %vm110 = vmxor %vm88, 1
    %vm111 = vmxor %vm89, 1
    %vm112 = vmand %vm108, %vm110
    %vm113 = vmand %vm109, %vm111
    %v114 = vsel %vm112, 1, 0
    %v115 = vsel %vm113, 1, 0
    %v116 = vcvt.s32.f32 %v114
    %v117 = vcvt.s32.f32 %v115
    %v118 = vmul.f32 %v96, 1.442695
    %v119 = vpow.pop %v118
    %v120 = vmul.f32 %v97, 1.442695
    %v121 = vpow.pop %v120
    %v122 = vsel %vm88, 0.0, %v119
    %v123 = vsel %vm89, 0.0, %v121
    %v124 = vld [vmem:[%s2] sm:$0x1]
    %v125 = vld [vmem:[%s3] sm:$0x1]
    %v127 = vperm.slane %v125, 0
    %v129 = vmul.f32 %v116, %v127
    %v130 = vmul.f32 %v117, %v127
    %v132 = vperm.slane %v124, 0
    %v134 = vadd.f32 %v132, %v129
    %v135 = vadd.f32 %v132, %v130
    %v136 = vmul.f32 %v122, %v134
    %v137 = vmul.f32 %v123, %v135
    %138 = vadd.xlane.f32.xlu0 %v136
    %v139 = vpop.xlane.xlu0 %138
    %140 = vadd.xlane.f32.xlu0 %v137
    %v141 = vpop.xlane.xlu0 %140
    %v142 = vlog2.pop %v139
    %v143 = vmul.f32 %v142, 0.6931472
    %v144 = vlog2.pop %v141
    %v145 = vmul.f32 %v144, 0.6931472
    %v146 = vmul.f32 %v116, %v96
    %v147 = vmul.f32 %v117, %v97
    %148 = vadd.xlane.f32.xlu0 %v146
    %v149 = vpop.xlane.xlu0 %148
    %150 = vadd.xlane.f32.xlu0 %v147
    %v151 = vpop.xlane.xlu0 %150
    %152 = vadd.xlane.f32.xlu0 %v116
    %v153 = vpop.xlane.xlu0 %152
    %154 = vadd.xlane.f32.xlu0 %v117
    %v155 = vpop.xlane.xlu0 %154
    %vm156 = vcmp.gt.f32.partialorder %v153, 0.0
    %vm157 = vcmp.gt.f32.partialorder %v155, 0.0
    %v158 = vmax.f32 %v153, 1.0
    %v159 = vmax.f32 %v155, 1.0
    %v160 = vrcp.pop %v158
    %v161 = vmul.f32 %v158, %v160
    %v162 = vsub.f32 1.0, %v161
    %v163 = vmul.f32 %v160, %v162
    %v164 = vadd.f32 %v160, %v163
    %vm165 = vweird.f32 %v158
    %vm166 = vweird.f32 %v160
    %vm167 = vmor %vm165, %vm166
    %v168 = vsel %vm167, %v160, %v164
    %v169 = vand.u32 2147483647, %v158
    %vm170 = vcmp.eq.f32.partialorder %v169, 8.507059e+37
    %v171 = vand.u32 %v158, 2147483648
    %v172 = vor.u32 1.1754944e-38, %v171
    %v173 = vsel %vm170, %v172, %v168
    %v174 = vmul.f32 %v149, %v173
    %v175 = vrcp.pop %v159
    %v176 = vmul.f32 %v159, %v175
    %v177 = vsub.f32 1.0, %v176
    %v178 = vmul.f32 %v175, %v177
    %v179 = vadd.f32 %v175, %v178
    %vm180 = vweird.f32 %v159
    %vm181 = vweird.f32 %v175
    %vm182 = vmor %vm180, %vm181
    %v183 = vsel %vm182, %v175, %v179
    %v184 = vand.u32 2147483647, %v159
    %vm185 = vcmp.eq.f32.partialorder %v184, 8.507059e+37
    %v186 = vand.u32 %v159, 2147483648
    %v187 = vor.u32 1.1754944e-38, %v186
    %v188 = vsel %vm185, %v187, %v183
    %v189 = vmul.f32 %v151, %v188
    %v190 = vsub.f32 %v174, %v143
    %v191 = vsub.f32 %v189, %v145
    %v192 = vsub.f32 0.0, %v190
    %v193 = vsub.f32 0.0, %v191
    %v194 = vsel %vm156, %v192, 0.0
    %v195 = vsel %vm157, %v193, 0.0
    %v196 = vadd.f32 %v194, %v195
    %v197 = vrot.slane %v196, 4
    %v198 = vadd.f32 %v196, %v197
    %v199 = vrot.slane %v198, 2
    %v200 = vadd.f32 %v198, %v199
    %v201 = vrot.slane %v200, 1
    %v202 = vadd.f32 %v200, %v201
    %203 = vst [vmem:[#allocation5] sm:$0x1] %v202
    // Predicated region
    $region30: #{tpu_custom_call.1} parent=1 // pred_check
      _
    $region31: #{tpu_custom_call.1} parent=1 // pred_check_branch
      %205 = sbr.rel (0) target = $region33
    $region32: #{tpu_custom_call.1} parent=1 // pred_region
      %207 = vsyncadd [#allocation4], 0
      %s209 = sshll.u32 [#allocation5], 4
      %s210 = int_to_ptr.vmem [resolvable:$true] %s209
      %s211 = sshll.u32 %s6, 4
      %s212 = int_to_ptr.hbm [resolvable:$true] %s211
      %214 = dma.vmem_to_hbm [thread:$0]  %s210, 16, %s212, [#allocation4]
    $region33: #{tpu_custom_call.1} parent=1 // pred_fallthru
      _
    // Predicated region
    $region34: #{tpu_custom_call.1} parent=1 // pred_check
      _
    $region35: #{tpu_custom_call.1} parent=1 // pred_check_branch
      %216 = sbr.rel (0) target = $region37
    $region36: #{tpu_custom_call.1} parent=1 // pred_region
      %218 = dma.done [#allocation4], 16
    $region37: #{tpu_custom_call.1} parent=1 // pred_fallthru
      _
    %219 = vsyncpa [#allocation3], 1
    %220 = vsyncpa [#allocation4], 1

</llo_original>
